<compile_context>
chip_gen: v5e
topology: v5e:2x2
jax: 0.10.0
libtpu: 0.0.40
codegen_flags: <defaults>
</compile_context>

<pallas_src>
import functools

import jax
import jax.numpy as jnp
from jax import lax
from jax.experimental import pallas as pl
from jax.experimental.pallas import tpu as pltpu


def _round_up(x, m):
    return ((x + m - 1) // m) * m


def _clip_loss_kernel(n, has_pad,
                      scale_ref, s_row_ref, g_col_ref,
                      row_out_ref, cmax_out_ref, csum_out_ref,
                      m_ref, l_ref):
    # scale_ref:   (1, 1) f32 SMEM  logit_scale
    # s_row_ref:   (bm, D) seq feature tile for row block i (resident across j)
    # g_col_ref:   (bn, D) graph feature tile for column block j (streamed)
    # row_out_ref: (1, 1) f32 SMEM  sum over valid rows of lse_seq for this row block
    # cmax/csum:   (1, 1, 1, bn) f32 per-(i, j) partial column max / sum-exp
    # m_ref/l_ref: (bm, 1) f32 VMEM running row max / row sum (online LSE)
    i = pl.program_id(0)
    j = pl.program_id(1)
    last_j = pl.num_programs(1) - 1

    @pl.when(j == 0)
    def _init():
        m_ref[...] = jnp.full_like(m_ref, -jnp.inf)
        l_ref[...] = jnp.zeros_like(l_ref)

    # Single MXU matmul per step; logits_per_graph is just the transpose of this,
    # so it never needs its own matmul.  Contract the feature dim of both operands
    # (no explicit transpose of the column tile); accumulate in f32.
    dnums = (((1,), (1,)), ((), ()))
    logits = lax.dot_general(s_row_ref[...], g_col_ref[...], dnums,
                             preferred_element_type=jnp.float32)       # (bm, bn)
    # Scale the f32 logits post-matmul (hoists scaling out of the operand path and
    # avoids bf16 double-rounding of the features).
    logits = logits * scale_ref[0, 0]

    if has_pad:  # static: emitted only when N was padded to a block multiple
        bm_, bn_ = logits.shape
        col_ids = lax.broadcasted_iota(jnp.int32, (bm_, bn_), 1) + j * bn_
        row_ids = lax.broadcasted_iota(jnp.int32, (bm_, bn_), 0) + i * bm_
        logits = jnp.where((col_ids < n) & (row_ids < n), logits,
                           jnp.float32(-1e30))

    # --- seq-direction CE: online row LSE across column blocks ------------------
    m_prev = m_ref[...]
    m_new = jnp.maximum(m_prev, jnp.max(logits, axis=1, keepdims=True))
    l_ref[...] = (l_ref[...] * jnp.exp(m_prev - m_new)
                  + jnp.sum(jnp.exp(logits - m_new), axis=1, keepdims=True))
    m_ref[...] = m_new

    # --- graph-direction CE: per-(i, j) partial column stats (combined in wrapper)
    c_max = jnp.max(logits, axis=0, keepdims=True)                     # (1, bn)
    c_sum = jnp.sum(jnp.exp(logits - c_max), axis=0, keepdims=True)    # (1, bn)
    cmax_out_ref[...] = c_max.reshape(1, 1, 1, -1)
    csum_out_ref[...] = c_sum.reshape(1, 1, 1, -1)

    @pl.when(j == last_j)
    def _finalize():
        lse = m_ref[...] + jnp.log(l_ref[...])                         # (bm, 1)
        if has_pad:
            bm_ = lse.shape[0]
            rid = lax.broadcasted_iota(jnp.int32, (bm_, 1), 0) + i * bm_
            lse = jnp.where(rid < n, lse, jnp.float32(0.0))
        row_out_ref[0, 0] = jnp.sum(lse)


def _choose_blocks(n, d, itemsize, bm_max=512, bn_max=256):
    """Pick (bm, bn, n_pad) with bn | bm | n_pad, VMEM-safe, megacore-friendly."""
    nr8 = _round_up(n, 8)
    bn = min(bn_max, nr8)
    bm = min(bm_max, _round_up(nr8, bn))
    # Keep the double-buffered (bm, D) row tile around <= 8 MiB so the default
    # scoped VMEM limit is respected even for large D (v7x has only 64 MiB total).
    cap = max(bn, ((4 * 1024 * 1024) // max(1, d * itemsize)) // bn * bn)
    bm = max(bn, min(bm, cap))
    # v7x megacore: prefer >= 2 row blocks on the "parallel" axis when possible.
    if bm > bn and _round_up(n, bm) // bm < 2:
        bm = max(bn, (bm // 2) // bn * bn)
    n_pad = _round_up(n, bm)
    return bm, bn, n_pad


def clip_loss(seq_features, graph_features, logit_scale):
    """seq_features, graph_features: (N, D); logit_scale: scalar. Returns scalar loss."""
    n, d = seq_features.shape
    assert graph_features.shape == (n, d)

    itemsize = jnp.dtype(seq_features.dtype).itemsize
    bm, bn, n_pad = _choose_blocks(n, d, itemsize)
    has_pad = n_pad != n
    if has_pad:
        pad = ((0, n_pad - n), (0, 0))   # pad along N only
        seq_p = jnp.pad(seq_features, pad)
        graph_p = jnp.pad(graph_features, pad)
    else:
        seq_p, graph_p = seq_features, graph_features

    num_i = n_pad // bm
    num_j = n_pad // bn
    scale = jnp.asarray(logit_scale, dtype=jnp.float32).reshape(1, 1)

    kernel = functools.partial(_clip_loss_kernel, n, has_pad)

    cost = pl.CostEstimate(
        flops=2 * n_pad * n_pad * d,
        transcendentals=2 * n_pad * n_pad,
        bytes_accessed=int(seq_p.size * itemsize
                           + graph_p.size * itemsize * num_i
                           + num_i * (1 + 2 * n_pad) * 4),
    )

    row_part, cmax, csum = pl.pallas_call(
        kernel,
        out_shape=(
            jax.ShapeDtypeStruct((num_i, 1), jnp.float32),              # row-block lse sums
            jax.ShapeDtypeStruct((num_i, num_j, 1, bn), jnp.float32),   # col max partials
            jax.ShapeDtypeStruct((num_i, num_j, 1, bn), jnp.float32),   # col sumexp partials
        ),
        grid_spec=pltpu.PrefetchScalarGridSpec(
            num_scalar_prefetch=0,
            grid=(num_i, num_j),
            in_specs=[
                pl.BlockSpec(memory_space=pltpu.MemorySpace.SMEM),      # logit_scale
                pl.BlockSpec((bm, d), lambda i, j: (i, 0)),             # seq rows (resident)
                pl.BlockSpec((bn, d), lambda i, j: (j, 0)),             # graph cols (streamed)
            ],
            out_specs=(
                pl.BlockSpec((1, 1), lambda i, j: (i, 0),
                             memory_space=pltpu.MemorySpace.SMEM),
                pl.BlockSpec((1, 1, 1, bn), lambda i, j: (i, j, 0, 0)),
                pl.BlockSpec((1, 1, 1, bn), lambda i, j: (i, j, 0, 0)),
            ),
            scratch_shapes=[pltpu.VMEM((bm, 1), jnp.float32),
                            pltpu.VMEM((bm, 1), jnp.float32)],
        ),
        compiler_params=pltpu.CompilerParams(
            dimension_semantics=("parallel", "arbitrary")),
        cost_estimate=cost,
    )(scale, seq_p, graph_p)

    # Stable combine of per-row-block column partials -> per-column LSE (graph CE).
    cmax = cmax.reshape(num_i, n_pad)
    csum = csum.reshape(num_i, n_pad)
    col_m = jnp.max(cmax, axis=0)                                       # (n_pad,)
    col_l = jnp.sum(csum * jnp.exp(cmax - col_m[None, :]), axis=0)      # (n_pad,)
    col_lse_sum = jnp.sum((col_m + jnp.log(col_l))[:n])

    # Correct-class logit (identical for both CE directions): tiny O(N*D) wrapper op.
    diag_sum = jnp.sum(
        jnp.asarray(logit_scale, jnp.float32)
        * jnp.sum(seq_features.astype(jnp.float32)
                  * graph_features.astype(jnp.float32), axis=-1))

    row_lse_sum = jnp.sum(row_part)
    return (row_lse_sum + col_lse_sum - 2.0 * diag_sum) / (2.0 * n)


def clip_loss_ref(seq_features, graph_features, logit_scale):
    """Pure-JAX reference replicating the PyTorch forward (world_size == 1)."""
    logits_per_seq = logit_scale * seq_features @ graph_features.T
    logits_per_graph = logit_scale * graph_features @ seq_features.T
    n = logits_per_seq.shape[0]
    labels = jnp.arange(n)

    def ce(logits):
        logp = jax.nn.log_softmax(logits, axis=-1)
        return -jnp.mean(logp[jnp.arange(n), labels])

    return 0.5 * (ce(logits_per_seq) + ce(logits_per_graph))


if __name__ == "__main__":
    key = jax.random.PRNGKey(0)
    k1, k2, k3, k4, k5, k6 = jax.random.split(key, 6)
    logit_scale = jnp.exp(jnp.float32(1.0))   # deterministic scalar (e^1)

    # Small aligned case: batch of 8 paired (seq, graph) embeddings, hidden=32.
    N, D = 8, 32
    seq = jax.random.normal(k1, (N, D), jnp.float32)
    graph = jax.random.normal(k2, (N, D), jnp.float32)
    out = jax.block_until_ready(clip_loss(seq, graph, logit_scale))
    ref = jax.block_until_ready(clip_loss_ref(seq, graph, logit_scale))
    assert jnp.allclose(out, ref, rtol=1e-5, atol=1e-5), (out, ref)

    # Ragged case (N not a multiple of the block size) -> padding / masking path.
    N2 = 12
    seq2 = jax.random.normal(k3, (N2, D), jnp.float32)
    graph2 = jax.random.normal(k4, (N2, D), jnp.float32)
    out2 = jax.block_until_ready(clip_loss(seq2, graph2, logit_scale))
    ref2 = jax.block_until_ready(clip_loss_ref(seq2, graph2, logit_scale))
    assert jnp.allclose(out2, ref2, rtol=1e-5, atol=1e-5), (out2, ref2)

    # Multi-block case: exercises the online row LSE across column blocks AND the
    # cross-row-block column-LSE combine (grid (2, 2), N=300 padded to 512).
    N3 = 300
    seq3 = jax.random.normal(k5, (N3, D), jnp.float32)
    graph3 = jax.random.normal(k6, (N3, D), jnp.float32)
    out3 = jax.block_until_ready(clip_loss(seq3, graph3, logit_scale))
    ref3 = jax.block_until_ready(clip_loss_ref(seq3, graph3, logit_scale))
    assert jnp.allclose(out3, ref3, rtol=1e-4, atol=1e-4), (out3, ref3)

    print("KERNEL_OK")
</pallas_src>

<mosaic_0001>
module attributes {stable_mosaic.version = 11 : i64} {
  func.func @_clip_loss_kernel(%arg0: i32, %arg1: i32, %arg2: memref<1x1xf32, #tpu.memory_space<smem>>, %arg3: memref<8x32xf32, #tpu.memory_space<vmem>>, %arg4: memref<8x32xf32, #tpu.memory_space<vmem>>, %arg5: memref<1x1xf32, #tpu.memory_space<smem>>, %arg6: memref<1x1x1x8xf32, #tpu.memory_space<vmem>>, %arg7: memref<1x1x1x8xf32, #tpu.memory_space<vmem>>, %arg8: memref<8x1xf32, #tpu.memory_space<vmem>>, %arg9: memref<8x1xf32, #tpu.memory_space<vmem>>) attributes {dimension_semantics = [#tpu.dimension_semantics<parallel>, #tpu.dimension_semantics<arbitrary>], iteration_bounds = array<i64: 1, 1>, scalar_prefetch = 0 : i64, scratch_operands = 2 : i64, tpu.core_type = #tpu.core_type<tc>, window_params = [{transform_indices = @transform_0, window_bounds = array<i64: 1, 1>}, {transform_indices = @transform_1, window_bounds = array<i64: 8, 32>}, {transform_indices = @transform_2, window_bounds = array<i64: 8, 32>}, {transform_indices = @transform_3, window_bounds = array<i64: 1, 1>}, {transform_indices = @transform_4, window_bounds = array<i64: 1, 1, 1, 8>}, {transform_indices = @transform_5, window_bounds = array<i64: 1, 1, 1, 8>}]} {
    %c0_i32 = arith.constant 0 : i32
    %0 = arith.cmpi eq, %arg1, %c0_i32 : i32
    %1 = arith.extui %0 : i1 to i32
    %c0_i32_0 = arith.constant 0 : i32
    %2 = arith.cmpi ne, %1, %c0_i32_0 : i32
    scf.if %2 {
      %cst_28 = arith.constant 0xFF800000 : f32
      %39 = vector.broadcast %cst_28 : f32 to vector<8x1xf32>
      %c0_29 = arith.constant 0 : index
      %c0_30 = arith.constant 0 : index
      %40 = vector.load %arg8[%c0_29, %c0_30] : memref<8x1xf32, #tpu.memory_space<vmem>>, vector<8x1xf32>
      tpu.vector_store %arg8[%c0_29, %c0_30], %39 {strides = array<i32>} : memref<8x1xf32, #tpu.memory_space<vmem>>, vector<8x1xf32>,
      %cst_31 = arith.constant 0.000000e+00 : f32
      %41 = vector.broadcast %cst_31 : f32 to vector<8x1xf32>
      %c0_32 = arith.constant 0 : index
      %c0_33 = arith.constant 0 : index
      %42 = vector.load %arg9[%c0_32, %c0_33] : memref<8x1xf32, #tpu.memory_space<vmem>>, vector<8x1xf32>
      tpu.vector_store %arg9[%c0_32, %c0_33], %41 {strides = array<i32>} : memref<8x1xf32, #tpu.memory_space<vmem>>, vector<8x1xf32>,
    } else {
    }
    %c0 = arith.constant 0 : index
    %c0_1 = arith.constant 0 : index
    %3 = vector.load %arg3[%c0, %c0_1] : memref<8x32xf32, #tpu.memory_space<vmem>>, vector<8x32xf32>
    %c0_2 = arith.constant 0 : index
    %c0_3 = arith.constant 0 : index
    %4 = vector.load %arg4[%c0_2, %c0_3] : memref<8x32xf32, #tpu.memory_space<vmem>>, vector<8x32xf32>
    %cst = arith.constant dense<0.000000e+00> : vector<8x8xf32>
    %5 = tpu.matmul %3, %4, %cst {dimension_numbers = #tpu.dot_dimension_numbers<[1], [1], [0], [0], [0, 0, 1, 0], [], []>} : vector<8x32xf32>, vector<8x32xf32>, vector<8x8xf32> -> vector<8x8xf32>
    %c0_4 = arith.constant 0 : index
    %c0_5 = arith.constant 0 : index
    %6 = memref.load %arg2[%c0_4, %c0_5] : memref<1x1xf32, #tpu.memory_space<smem>>
    %7 = vector.broadcast %6 : f32 to vector<8x8xf32>
    %8 = arith.mulf %5, %7 : vector<8x8xf32>
    %c0_6 = arith.constant 0 : index
    %c0_7 = arith.constant 0 : index
    %9 = vector.load %arg8[%c0_6, %c0_7] : memref<8x1xf32, #tpu.memory_space<vmem>>, vector<8x1xf32>
    %cst_8 = arith.constant dense<0xFF800000> : vector<8xf32>
    %10 = vector.multi_reduction <maximumf>, %8, %cst_8 [1] : vector<8x8xf32> to vector<8xf32>
    %11 = vector.shape_cast %10 : vector<8xf32> to vector<8x1xf32>
    %12 = arith.maximumf %9, %11 : vector<8x1xf32>
    %c0_9 = arith.constant 0 : index
    %c0_10 = arith.constant 0 : index
    %13 = vector.load %arg9[%c0_9, %c0_10] : memref<8x1xf32, #tpu.memory_space<vmem>>, vector<8x1xf32>
    %14 = arith.subf %9, %12 : vector<8x1xf32>
    %15 = math.exp %14 : vector<8x1xf32>
    %16 = arith.mulf %13, %15 : vector<8x1xf32>
    %17 = vector.broadcast %12 : vector<8x1xf32> to vector<8x8xf32>
    %18 = arith.subf %8, %17 : vector<8x8xf32>
    %19 = math.exp %18 : vector<8x8xf32>
    %cst_11 = arith.constant dense<0.000000e+00> : vector<8xf32>
    %20 = vector.multi_reduction <add>, %19, %cst_11 [1] : vector<8x8xf32> to vector<8xf32>
    %21 = vector.shape_cast %20 : vector<8xf32> to vector<8x1xf32>
    %22 = arith.addf %16, %21 : vector<8x1xf32>
    %c0_12 = arith.constant 0 : index
    %c0_13 = arith.constant 0 : index
    %23 = vector.load %arg9[%c0_12, %c0_13] : memref<8x1xf32, #tpu.memory_space<vmem>>, vector<8x1xf32>
    tpu.vector_store %arg9[%c0_12, %c0_13], %22 {strides = array<i32>} : memref<8x1xf32, #tpu.memory_space<vmem>>, vector<8x1xf32>,
    %c0_14 = arith.constant 0 : index
    %c0_15 = arith.constant 0 : index
    %24 = vector.load %arg8[%c0_14, %c0_15] : memref<8x1xf32, #tpu.memory_space<vmem>>, vector<8x1xf32>
    tpu.vector_store %arg8[%c0_14, %c0_15], %12 {strides = array<i32>} : memref<8x1xf32, #tpu.memory_space<vmem>>, vector<8x1xf32>,
    %cst_16 = arith.constant dense<0xFF800000> : vector<8xf32>
    %25 = vector.multi_reduction <maximumf>, %8, %cst_16 [0] : vector<8x8xf32> to vector<8xf32>
    %26 = vector.shape_cast %25 : vector<8xf32> to vector<1x8xf32>
    %27 = vector.broadcast %26 : vector<1x8xf32> to vector<8x8xf32>
    %28 = arith.subf %8, %27 : vector<8x8xf32>
    %29 = math.exp %28 : vector<8x8xf32>
    %cst_17 = arith.constant dense<0.000000e+00> : vector<8xf32>
    %30 = vector.multi_reduction <add>, %29, %cst_17 [0] : vector<8x8xf32> to vector<8xf32>
    %31 = vector.shape_cast %30 : vector<8xf32> to vector<1x8xf32>
    %32 = vector.shape_cast %26 : vector<1x8xf32> to vector<1x1x1x8xf32>
    %c0_18 = arith.constant 0 : index
    %c0_19 = arith.constant 0 : index
    %c0_20 = arith.constant 0 : index
    %c0_21 = arith.constant 0 : index
    %33 = vector.load %arg6[%c0_18, %c0_19, %c0_20, %c0_21] : memref<1x1x1x8xf32, #tpu.memory_space<vmem>>, vector<1x1x1x8xf32>
    tpu.vector_store %arg6[%c0_18, %c0_19, %c0_20, %c0_21], %32 {strides = array<i32>} : memref<1x1x1x8xf32, #tpu.memory_space<vmem>>, vector<1x1x1x8xf32>,
    %34 = vector.shape_cast %31 : vector<1x8xf32> to vector<1x1x1x8xf32>
    %c0_22 = arith.constant 0 : index
    %c0_23 = arith.constant 0 : index
    %c0_24 = arith.constant 0 : index
    %c0_25 = arith.constant 0 : index
    %35 = vector.load %arg7[%c0_22, %c0_23, %c0_24, %c0_25] : memref<1x1x1x8xf32, #tpu.memory_space<vmem>>, vector<1x1x1x8xf32>
    tpu.vector_store %arg7[%c0_22, %c0_23, %c0_24, %c0_25], %34 {strides = array<i32>} : memref<1x1x1x8xf32, #tpu.memory_space<vmem>>, vector<1x1x1x8xf32>,
    %c0_i32_26 = arith.constant 0 : i32
    %36 = arith.cmpi eq, %arg1, %c0_i32_26 : i32
    %37 = arith.extui %36 : i1 to i32
    %c0_i32_27 = arith.constant 0 : i32
    %38 = arith.cmpi ne, %37, %c0_i32_27 : i32
    scf.if %38 {
      %c0_28 = arith.constant 0 : index
      %c0_29 = arith.constant 0 : index
      %39 = vector.load %arg8[%c0_28, %c0_29] : memref<8x1xf32, #tpu.memory_space<vmem>>, vector<8x1xf32>
      %c0_30 = arith.constant 0 : index
      %c0_31 = arith.constant 0 : index
      %40 = vector.load %arg9[%c0_30, %c0_31] : memref<8x1xf32, #tpu.memory_space<vmem>>, vector<8x1xf32>
      %41 = math.log %40 : vector<8x1xf32>
      %42 = arith.addf %39, %41 : vector<8x1xf32>
      %43 = vector.shape_cast %42 : vector<8x1xf32> to vector<1x8x1xf32>
      %cst_32 = arith.constant dense<0.000000e+00> : vector<1xf32>
      %44 = vector.multi_reduction <add>, %43, %cst_32 [1, 2] : vector<1x8x1xf32> to vector<1xf32>
      %45 = vector.shape_cast %44 : vector<1xf32> to vector<1x1x1xf32>
      %46 = vector.extract %45[0, 0, 0] : f32 from vector<1x1x1xf32>
      %c0_33 = arith.constant 0 : index
      %c0_34 = arith.constant 0 : index
      %47 = memref.load %arg5[%c0_33, %c0_34] : memref<1x1xf32, #tpu.memory_space<smem>>
      memref.store %46, %arg5[%c0_33, %c0_34] : memref<1x1xf32, #tpu.memory_space<smem>>
    } else {
    }
    return
  }
  func.func @transform_0(%arg0: i32, %arg1: i32) -> (i32, i32) {
    %c0_i32 = arith.constant 0 : i32
    %c0_i32_0 = arith.constant 0 : i32
    %c0_i32_1 = arith.constant 0 : i32
    return %c0_i32, %c0_i32_0 : i32, i32
  }
  func.func @transform_1(%arg0: i32, %arg1: i32) -> (i32, i32) {
    %c0_i32 = arith.constant 0 : i32
    %c0_i32_0 = arith.constant 0 : i32
    return %arg0, %c0_i32 : i32, i32
  }
  func.func @transform_2(%arg0: i32, %arg1: i32) -> (i32, i32) {
    %c0_i32 = arith.constant 0 : i32
    %c0_i32_0 = arith.constant 0 : i32
    return %arg1, %c0_i32 : i32, i32
  }
  func.func @transform_3(%arg0: i32, %arg1: i32) -> (i32, i32) {
    %c0_i32 = arith.constant 0 : i32
    %c0_i32_0 = arith.constant 0 : i32
    return %arg0, %c0_i32 : i32, i32
  }
  func.func @transform_4(%arg0: i32, %arg1: i32) -> (i32, i32, i32, i32) {
    %c0_i32 = arith.constant 0 : i32
    %c0_i32_0 = arith.constant 0 : i32
    %c0_i32_1 = arith.constant 0 : i32
    return %arg0, %arg1, %c0_i32, %c0_i32_0 : i32, i32, i32, i32
  }
  func.func @transform_5(%arg0: i32, %arg1: i32) -> (i32, i32, i32, i32) {
    %c0_i32 = arith.constant 0 : i32
    %c0_i32_0 = arith.constant 0 : i32
    %c0_i32_1 = arith.constant 0 : i32
    return %arg0, %arg1, %c0_i32, %c0_i32_0 : i32, i32, i32, i32
  }
}

</mosaic_0001>

<llo_original>
// kernel: tpu_custom_call.1
$region0: #{tpu_custom_call.1}
  #allocation0 [shape = 'u32[]', space=smem, size = 0x4, offset = 0x4, fixed_abs, tag = 'smem constant byte address 0x4 - core index']
  #allocation1 [shape = 'u32[72,128]{1,0:T(1,128)}', space=vmem, size = 0x9000, scoped, tag = 'internal scratch']
  #allocation2 [shape = 'f32[8,1]{1,0:T(8,128)}', space=vmem, size = 0x1000, scoped, tag = 'scratch operand']
  #allocation3 [shape = 'f32[8,1]{1,0:T(8,128)}', space=vmem, size = 0x1000, scoped, tag = 'scratch operand']
  #allocation4 [shape = 'f32[1,1]{1,0:T(1,128)S(6)}', space=smem, size = 0x200, scoped, tag = 'scoped memory for tpu_custom_call.1']
  %s0 = inlined_call_operand.<no memory space> [shape: f32[1,1], index: 0, kind: input, shape index: {}]
  %s1 = inlined_call_operand.hbm [shape: f32[8,32], index: 1, kind: input, shape index: {}]
  %s2 = inlined_call_operand.hbm [shape: f32[8,32], index: 2, kind: input, shape index: {}]
  %s3 = inlined_call_operand.hbm [shape: f32[1,1], index: 3, kind: output, shape index: {0}]
  %s4 = inlined_call_operand.hbm [shape: f32[1,1,1,8], index: 4, kind: output, shape index: {1}]
  %s5 = inlined_call_operand.hbm [shape: f32[1,1,1,8], index: 5, kind: output, shape index: {2}]
  %6 = xla_tuple %s3, %s4, %s5
  %s7 = sld [smem:[#allocation0]]
  $region54: #{tpu_custom_call.1} parent=0
    _
  %s9 = ssub.s32 1, %s7
  %s10 = scalar_select 0, %s9, %s7
  %11 = sst [smem:[#allocation4]] %s0
  $region1: #{tpu_custom_call.1} parent=0
    #allocation5 [shape = 'u8[4096]{0}', space=vmem, size = 0x1000, scoped, tag = 'input window, operand 1, single buffered']
    #allocation6 [shape = 's32[1]{0}', space=sflag, size = 0x4, scoped, tag = 'scoped memory for tpu_custom_call.1']
    #allocation7 [shape = 's32[1]{0}', space=sflag, size = 0x4, scoped, tag = 'scoped memory for tpu_custom_call.1']
    #allocation8 [shape = 's32[1]{0}', space=sflag, size = 0x4, scoped, tag = 'scoped memory for tpu_custom_call.1']
    #allocation9 [shape = 'u8[4096]{0}', space=vmem, size = 0x1000, scoped, tag = 'input window, operand 2, single buffered']
    #allocation10 [shape = 's32[1]{0}', space=sflag, size = 0x4, scoped, tag = 'scoped memory for tpu_custom_call.1']
    #allocation11 [shape = 'u8[512]{0}', space=smem, size = 0x200, scoped, tag = 'output window, operand 0, single buffered']
    #allocation12 [shape = 'u8[512]{0}', space=vmem, size = 0x400, scoped, tag = 'output window, operand 1, single buffered']
    #allocation13 [shape = 'u8[512]{0}', space=vmem, size = 0x400, scoped, tag = 'output window, operand 2, single buffered']
    #allocation14 [shape = 's32[1]{0}', space=sflag, size = 0x4, scoped, tag = 'scoped memory for tpu_custom_call.1']
    %12 = vsyncpa [#allocation6], 0
    %13 = vsyncpa [#allocation10], 0
    %14 = vsyncpa [#allocation8], 0
    %15 = vsyncpa [#allocation7], 0
    %16 = vsyncpa [#allocation14], 0
    // Predicated region
    $region2: #{tpu_custom_call.1} parent=1 // pred_check
      _
    $region3: #{tpu_custom_call.1} parent=1 // pred_check_branch
      %18 = sbr.rel (0) target = $region5
    $region4: #{tpu_custom_call.1} parent=1 // pred_region
      _
    $region5: #{tpu_custom_call.1} parent=1 // pred_fallthru
      _
    // Predicated region
    $region6: #{tpu_custom_call.1} parent=1 // pred_check
      _
    $region7: #{tpu_custom_call.1} parent=1 // pred_check_branch
      %20 = sbr.rel (0) target = $region9
    $region8: #{tpu_custom_call.1} parent=1 // pred_region
      %22 = vsyncadd [#allocation6], 0
      %s24 = sshll.u32 %s1, 4
      %s25 = int_to_ptr.hbm [resolvable:$true] %s24
      %s26 = sshll.u32 [#allocation5], 4
      %s27 = int_to_ptr.vmem [resolvable:$true] %s26
      %29 = dma.hbm_to_vmem [thread:$0]  %s25, 128, %s27, [#allocation6]
    $region9: #{tpu_custom_call.1} parent=1 // pred_fallthru
      _
    // Predicated region
    $region10: #{tpu_custom_call.1} parent=1 // pred_check
      _
    $region11: #{tpu_custom_call.1} parent=1 // pred_check_branch
      %31 = sbr.rel (0) target = $region13
    $region12: #{tpu_custom_call.1} parent=1 // pred_region
      %33 = vsyncadd [#allocation10], 0
      %s35 = sshll.u32 %s2, 4
      %s36 = int_to_ptr.hbm [resolvable:$true] %s35
      %s37 = sshll.u32 [#allocation9], 4
      %s38 = int_to_ptr.vmem [resolvable:$true] %s37
      %40 = dma.hbm_to_vmem [thread:$0]  %s36, 128, %s38, [#allocation10]
    $region13: #{tpu_custom_call.1} parent=1 // pred_fallthru
      _
    // Predicated region
    $region14: #{tpu_custom_call.1} parent=1 // pred_check
      _
    $region15: #{tpu_custom_call.1} parent=1 // pred_check_branch
      %42 = sbr.rel (0) target = $region17
    $region16: #{tpu_custom_call.1} parent=1 // pred_region
      %44 = dma.done [#allocation6], 128
    $region17: #{tpu_custom_call.1} parent=1 // pred_fallthru
      _
    // Predicated region
    $region18: #{tpu_custom_call.1} parent=1 // pred_check
      _
    $region19: #{tpu_custom_call.1} parent=1 // pred_check_branch
      %46 = sbr.rel (0) target = $region21
    $region20: #{tpu_custom_call.1} parent=1 // pred_region
      %48 = dma.done [#allocation10], 128
    $region21: #{tpu_custom_call.1} parent=1 // pred_fallthru
      _
    %p49 = scmp.eq.s32.totalorder 0, 0
    // Predicated region
    $region22: #{tpu_custom_call.1} parent=1 // pred_check
      %p50 = pneg %p49
    $region23: #{tpu_custom_call.1} parent=1 // pred_check_branch
      %52 = sbr.rel (%p50) target = $region25
    $region24: #{tpu_custom_call.1} parent=1 // pred_region
      %vm53 = vcmask 7168
      %54 = vst.msk [vmem:[#allocation2] sm:$0xff] %vm53, -inf
      %55 = vst.msk [vmem:[#allocation3] sm:$0xff] %vm53, 0.0
    $region25: #{tpu_custom_call.1} parent=1 // pred_fallthru
      _
    %v56 = vld [vmem:[#allocation5] sm:$0xff]
    %v57 = vld [vmem:[#allocation9] sm:$0xff]
    %vm58 = vcmask 261120
    %v60 = vsel %vm58, %v56, 0
    %v63 = vsel %vm58, %v57, 0
    %65 = vmatpush.xpose.msra.mxu0 0.0
    %66 = vmatpush.xpose.msra.mxu0 0.0
    %67 = vmatpush.xpose.msra.mxu0 0.0
    %68 = vmatpush.xpose.msra.mxu0 0.0
    %69 = vmatpush.xpose.msra.mxu0 0.0
    %70 = vmatpush.xpose.msra.mxu0 0.0
    %71 = vmatpush.xpose.msra.mxu0 0.0
    %72 = vmatpush.xpose.msra.mxu0 0.0
    %73 = vmatpush.xpose.msra.mxu0 0.0
    %74 = vmatpush.xpose.msra.mxu0 0.0
    %75 = vmatpush.xpose.msra.mxu0 0.0
    %76 = vmatpush.xpose.msra.mxu0 0.0
    %77 = vmatpush.xpose.msra.mxu0 0.0
    %78 = vmatpush.xpose.msra.mxu0 0.0
    %79 = vmatpush.xpose.msra.mxu0 0.0
    %80 = vmatpush.xpose.msra.mxu0 %v63
    %81 = vmatmul.f32.gmra.mxu0 %v60
    %v82 = vpop.f32.mrf.mxu0
    %v83 = vadd.f32 0.0, %v82
    %84 = vdwg.mxu0
    %s85 = sld [smem:[#allocation4]]
    %v86 = vstv %s85
    %v87 = vmul.f32 %v83, %v86
    %v88 = vld [vmem:[#allocation2] sm:$0xff]
    %vm89 = vcmask 64512
    %v90 = vsel %vm89, %v87, -inf
    %91 = vmax.xlane.f32.xlu0 %v90
    %v92 = vpop.xlane.xlu0 %91
    %v93 = vmax.f32 %v88, %v92
    %v94 = vld [vmem:[#allocation3] sm:$0xff]
    %v95 = vsub.f32 %v88, %v93
    %v96 = vmul.f32 %v95, 1.442695
    %v97 = vpow.pop %v96
    %v98 = vmul.f32 %v94, %v97
    %100 = vset.pattern.permute.xlu0 0
    %101 = vperm.xlu0 %100, %v93
    %v102 = vpop.permute.xlu0 %101
    %v104 = vsub.f32 %v87, %v102
    %v105 = vmul.f32 %v104, 1.442695
    %v106 = vpow.pop %v105
    %v107 = vsel %vm89, %v106, 0.0
    %108 = vadd.xlane.f32.xlu0 %v107
    %v109 = vpop.xlane.xlu0 %108
    %v110 = vadd.f32 %v98, %v109
    %vm111 = vcmask 7168
    %112 = vst.msk [vmem:[#allocation3] sm:$0xff] %vm111, %v110
    %113 = vst.msk [vmem:[#allocation2] sm:$0xff] %vm111, %v93
    %v114 = vrot.slane %v90, 4
    %v115 = vmax.f32 %v90, %v114
    %v116 = vrot.slane %v115, 2
    %v117 = vmax.f32 %v115, %v116
    %v118 = vrot.slane %v117, 1
    %v119 = vmax.f32 %v117, %v118
    %v120 = vsub.f32 %v87, %v119
    %v121 = vmul.f32 %v120, 1.442695
    %v122 = vpow.pop %v121
    %v123 = vsel %vm89, %v122, 0.0
    %v124 = vrot.slane %v123, 4
    %v125 = vadd.f32 %v123, %v124
    %v126 = vrot.slane %v125, 2
    %v127 = vadd.f32 %v125, %v126
    %v128 = vrot.slane %v127, 1
    %v129 = vadd.f32 %v127, %v128
    %vm130 = vcmask 57344
    %131 = vst.msk [vmem:[#allocation12] sm:$0x1] %vm130, %v119
    %132 = vst.msk [vmem:[#allocation13] sm:$0x1] %vm130, %v129
    // Predicated region
    $region26: #{tpu_custom_call.1} parent=1 // pred_check
      %p133 = pneg %p49
    $region27: #{tpu_custom_call.1} parent=1 // pred_check_branch
      %135 = sbr.rel (%p133) target = $region29
    $region28: #{tpu_custom_call.1} parent=1 // pred_region
      %v136 = vld [vmem:[#allocation2] sm:$0xff]
      %v137 = vld [vmem:[#allocation3] sm:$0xff]
      %v138 = vlog2.pop %v137
      %v139 = vmul.f32 %v138, 0.6931472
      %v140 = vadd.f32 %v136, %v139
      %v141 = vsel %vm111, %v140, 0.0
      %142 = vadd.xlane.f32.xlu0 %v141
      %v143 = vpop.xlane.xlu0 %142
      %v144 = vrot.slane %v143, 4
      %v145 = vadd.f32 %v143, %v144
      %v146 = vrot.slane %v145, 2
      %v147 = vadd.f32 %v145, %v146
      %v148 = vrot.slane %v147, 1
      %v149 = vadd.f32 %v147, %v148
      %s150 = vtos %v149
      %s151 = scalar_lea.smem [#allocation11], 0
      %152 = sst [smem:[%s151]] %s150
    $region29: #{tpu_custom_call.1} parent=1 // pred_fallthru
      _
    // Predicated region
    $region30: #{tpu_custom_call.1} parent=1 // pred_check
      _
    $region31: #{tpu_custom_call.1} parent=1 // pred_check_branch
      %154 = sbr.rel (0) target = $region33
    $region32: #{tpu_custom_call.1} parent=1 // pred_region
      %156 = vsyncadd [#allocation8], 0
      %s158 = sshll.u32 %s3, 4
      %s159 = int_to_ptr.hbm [resolvable:$true] %s158
      %161 = dma.smem_to_hbm [#allocation11], 16, %s159, [#allocation8]
    $region33: #{tpu_custom_call.1} parent=1 // pred_fallthru
      _
    // Predicated region
    $region34: #{tpu_custom_call.1} parent=1 // pred_check
      _
    $region35: #{tpu_custom_call.1} parent=1 // pred_check_branch
      %163 = sbr.rel (0) target = $region37
    $region36: #{tpu_custom_call.1} parent=1 // pred_region
      %165 = vsyncadd [#allocation7], 0
      %s167 = sshll.u32 [#allocation12], 4
      %s168 = int_to_ptr.vmem [resolvable:$true] %s167
      %s169 = sshll.u32 %s4, 4
      %s170 = int_to_ptr.hbm [resolvable:$true] %s169
      %172 = dma.vmem_to_hbm [thread:$0]  %s168, 16, %s170, [#allocation7]
    $region37: #{tpu_custom_call.1} parent=1 // pred_fallthru
      _
    // Predicated region
    $region38: #{tpu_custom_call.1} parent=1 // pred_check
      _
    $region39: #{tpu_custom_call.1} parent=1 // pred_check_branch
      %174 = sbr.rel (0) target = $region41
    $region40: #{tpu_custom_call.1} parent=1 // pred_region
      %176 = vsyncadd [#allocation14], 0
      %s178 = sshll.u32 [#allocation13], 4
      %s179 = int_to_ptr.vmem [resolvable:$true] %s178
      %s180 = sshll.u32 %s5, 4
      %s181 = int_to_ptr.hbm [resolvable:$true] %s180
      %183 = dma.vmem_to_hbm [thread:$0]  %s179, 16, %s181, [#allocation14]
    $region41: #{tpu_custom_call.1} parent=1 // pred_fallthru
      _
    // Predicated region
    $region42: #{tpu_custom_call.1} parent=1 // pred_check
      _
    $region43: #{tpu_custom_call.1} parent=1 // pred_check_branch
      %185 = sbr.rel (0) target = $region45
    $region44: #{tpu_custom_call.1} parent=1 // pred_region
      %187 = dma.done [#allocation8], 16
    $region45: #{tpu_custom_call.1} parent=1 // pred_fallthru
      _
    // Predicated region
    $region46: #{tpu_custom_call.1} parent=1 // pred_check
      _
    $region47: #{tpu_custom_call.1} parent=1 // pred_check_branch
      %189 = sbr.rel (0) target = $region49
    $region48: #{tpu_custom_call.1} parent=1 // pred_region
      %191 = dma.done [#allocation7], 16
    $region49: #{tpu_custom_call.1} parent=1 // pred_fallthru
      _
    // Predicated region
    $region50: #{tpu_custom_call.1} parent=1 // pred_check
      _
    $region51: #{tpu_custom_call.1} parent=1 // pred_check_branch
      %193 = sbr.rel (0) target = $region53
    $region52: #{tpu_custom_call.1} parent=1 // pred_region
      %195 = dma.done [#allocation14], 16
    $region53: #{tpu_custom_call.1} parent=1 // pred_fallthru
      _
    %196 = sfence
    %197 = vsyncpa [#allocation6], 1
    %198 = vsyncpa [#allocation10], 1
    %199 = vsyncpa [#allocation7], 1
    %200 = vsyncpa [#allocation14], 1
    %201 = vsyncpa [#allocation8], 1

</llo_original>
